<compile_context>
chip_gen: v7x
topology: tpu7x:2x2x1
jax: 0.10.0
libtpu: 0.0.40
codegen_flags: <defaults>
</compile_context>

<pallas_src>
import functools

import jax
import jax.numpy as jnp
from jax.experimental import pallas as pl
from jax.experimental.pallas import tpu as pltpu


LANE = 128  # TPU lane width; batch tiles are multiples of this.


def _round_up(x, m):
    return (x + m - 1) // m * m


def _choose_tile(batch, block_b):
    """Pick a batch tile (multiple of LANE) and the (possibly padded) batch."""
    block_b = max(LANE, _round_up(block_b, LANE))
    n_rows = _round_up(batch, LANE)          # lane-packed logit granularity
    tb = min(block_b, n_rows)
    # Prefer >= 4 grid steps when the batch allows it: 2 per v7x TensorCore
    # (grid axis is "parallel"), and keeps the DMA pipeline fed on v5e/v6e.
    if n_rows // tb < 4:
        tb = max(LANE, (n_rows // 4) // LANE * LANE)
    # Make the grid divide evenly (no ragged tail tile). Terminates at LANE.
    while n_rows % tb:
        tb -= LANE
    return tb, n_rows


def discriminator_kernel(x_ref, w1_ref, b1_ref, w2_ref, b2_ref, out_ref):
    # fc1 + ReLU. x arrives as f32; cast to bf16 on the VPU (hidden under the
    # tile DMA) so the wrapper never makes an extra HBM pass just to cast.
    x = x_ref[...].astype(w1_ref.dtype)
    h = jnp.dot(x, w1_ref[...], preferred_element_type=jnp.float32)
    h = jnp.maximum(h + b1_ref[...], 0.0)                     # [tb, H] f32

    # fc2 (1-wide head): contract the hidden dim for every row, producing the
    # logits directly as a lane-dense [1, tb] row -- no padded lanes and no
    # sublane->lane relayout needed for the packed store.
    row = jnp.einsum("oh,bh->ob", w2_ref[...], h,
                     preferred_element_type=jnp.float32)       # [1, tb] f32

    # Bias + sigmoid only on the real logits, then a full-width unmasked store.
    out_ref[...] = jax.nn.sigmoid(row + b2_ref[0]).astype(out_ref.dtype)


def init_discriminator_params(key, input_dim, hidden_dim,
                              compute_dtype=jnp.bfloat16):
    """nn.Linear-style U(-1/sqrt(fan_in), +1/sqrt(fan_in)) init.

    Layout is folded in once at init (no per-call transposes):
      w1: [input_dim, hidden_dim]  compute_dtype   (already [in, out])
      b1: [1, hidden_dim]          f32 row for cheap VPU broadcast-add
      w2: [1, hidden_dim]          f32 row (fc2 weight, no padding)
      b2: [1]                      f32 scalar (lives in SMEM inside the kernel)
    """
    k1, k2, k3, k4 = jax.random.split(key, 4)
    bound1 = 1.0 / (input_dim ** 0.5)
    bound2 = 1.0 / (hidden_dim ** 0.5)

    w1 = jax.random.uniform(k1, (input_dim, hidden_dim), jnp.float32,
                            -bound1, bound1)
    b1 = jax.random.uniform(k2, (1, hidden_dim), jnp.float32, -bound1, bound1)
    w2 = jax.random.uniform(k3, (1, hidden_dim), jnp.float32, -bound2, bound2)
    b2 = jax.random.uniform(k4, (1,), jnp.float32, -bound2, bound2)

    return (w1.astype(compute_dtype), b1, w2, b2)


@functools.partial(jax.jit, static_argnames=("block_b",))
def discriminator_forward(x, params, block_b=1024):
    """x: [B, input_dim] f32 -> sigmoid(fc2(relu(fc1(x)))): [B, 1] f32."""
    w1, b1, w2, b2 = params
    B, in_dim = x.shape

    tb, Bp = _choose_tile(B, block_b)
    if Bp != B:
        # Only hit when B is not a multiple of 128.
        # TODO(synk): mask the ragged tail tile in-kernel instead of paying an
        # extra HBM pass over x to pad it.
        x = jnp.pad(x, ((0, Bp - B), (0, 0)))

    out_row = pl.pallas_call(
        discriminator_kernel,
        out_shape=jax.ShapeDtypeStruct((1, Bp), jnp.float32),  # packed logits
        grid=(Bp // tb,),
        in_specs=[
            pl.BlockSpec((tb, in_dim), lambda i: (i, 0)),   # batch-tiled x (f32)
            pl.BlockSpec(w1.shape, lambda i: (0, 0)),       # weights resident
            pl.BlockSpec(b1.shape, lambda i: (0, 0)),
            pl.BlockSpec(w2.shape, lambda i: (0, 0)),
            pl.BlockSpec(memory_space=pltpu.MemorySpace.SMEM),  # scalar fc2 bias
        ],
        out_specs=pl.BlockSpec((1, tb), lambda i: (0, i)),  # lane-dense 4 B/row
        compiler_params=pltpu.CompilerParams(
            dimension_semantics=("parallel",),              # shard tiles over TCs
            vmem_limit_bytes=32 * 1024 * 1024),             # headroom for big tiles
    )(x, w1, b1, w2, b2)

    # Row 0 holds the Bp packed probabilities in batch order; drop the pad.
    return out_row[0, :B][:, None]


if __name__ == "__main__":
    key = jax.random.PRNGKey(0)
    k_x, k_p = jax.random.split(key)

    # Small but tiling-friendly shapes: hidden is lane-dense, batch = 2 tiles.
    batch, input_dim, hidden_dim = 256, 64, 128

    x = jax.random.normal(k_x, (batch, input_dim), jnp.float32)
    params = init_discriminator_params(k_p, input_dim, hidden_dim)

    out = discriminator_forward(x, params)
    out = jax.block_until_ready(out)

    # Pure-JAX reference replicating the kernel's bf16 rounding of x for fc1.
    w1, b1, w2, b2 = params
    xb = x.astype(jnp.bfloat16).astype(jnp.float32)
    h = jnp.maximum(xb @ w1.astype(jnp.float32) + b1, 0.0)
    ref = jax.nn.sigmoid(h @ w2.astype(jnp.float32).T + b2[0])

    assert out.shape == (batch, 1), out.shape
    assert jnp.allclose(out, ref, atol=1e-3, rtol=1e-3), \
        f"max abs err = {float(jnp.max(jnp.abs(out - ref)))}"

    print("KERNEL_OK")
</pallas_src>

<mosaic_0001>
module attributes {stable_mosaic.version = 11 : i64} {
  func.func @discriminator_kernel(%arg0: i32, %arg1: memref<128x64xf32, #tpu.memory_space<vmem>>, %arg2: memref<64x128xbf16, #tpu.memory_space<vmem>>, %arg3: memref<1x128xf32, #tpu.memory_space<vmem>>, %arg4: memref<1x128xf32, #tpu.memory_space<vmem>>, %arg5: memref<1xf32, #tpu.memory_space<smem>>, %arg6: memref<1x128xf32, #tpu.memory_space<vmem>>) attributes {dimension_semantics = [#tpu.dimension_semantics<parallel>], iteration_bounds = array<i64: 2>, scalar_prefetch = 0 : i64, scratch_operands = 0 : i64, tpu.core_type = #tpu.core_type<tc>, window_params = [{transform_indices = @transform_0, window_bounds = array<i64: 128, 64>}, {pipeline_mode = #tpu.pipeline_mode<synchronous>, transform_indices = @transform_1, window_bounds = array<i64: 64, 128>}, {pipeline_mode = #tpu.pipeline_mode<synchronous>, transform_indices = @transform_2, window_bounds = array<i64: 1, 128>}, {pipeline_mode = #tpu.pipeline_mode<synchronous>, transform_indices = @transform_3, window_bounds = array<i64: 1, 128>}, {transform_indices = @transform_4, window_bounds = array<i64: 1>}, {transform_indices = @transform_5, window_bounds = array<i64: 1, 128>}]} {
    %c0 = arith.constant 0 : index
    %c0_0 = arith.constant 0 : index
    %0 = vector.load %arg1[%c0, %c0_0] : memref<128x64xf32, #tpu.memory_space<vmem>>, vector<128x64xf32>
    %1 = arith.truncf %0 : vector<128x64xf32> to vector<128x64xbf16>
    %c0_1 = arith.constant 0 : index
    %c0_2 = arith.constant 0 : index
    %2 = vector.load %arg2[%c0_1, %c0_2] : memref<64x128xbf16, #tpu.memory_space<vmem>>, vector<64x128xbf16>
    %cst = arith.constant dense<0.000000e+00> : vector<128x128xf32>
    %3 = tpu.matmul %1, %2, %cst {dimension_numbers = #tpu.dot_dimension_numbers<[1], [0], [0], [1], [0, 0, 1, 1], [], []>} : vector<128x64xbf16>, vector<64x128xbf16>, vector<128x128xf32> -> vector<128x128xf32>
    %c0_3 = arith.constant 0 : index
    %c0_4 = arith.constant 0 : index
    %4 = vector.load %arg3[%c0_3, %c0_4] : memref<1x128xf32, #tpu.memory_space<vmem>>, vector<1x128xf32>
    %5 = vector.broadcast %4 : vector<1x128xf32> to vector<128x128xf32>
    %6 = arith.addf %3, %5 : vector<128x128xf32>
    %cst_5 = arith.constant 0.000000e+00 : f32
    %7 = vector.broadcast %cst_5 : f32 to vector<128x128xf32>
    %8 = arith.maximumf %6, %7 : vector<128x128xf32>
    %c0_6 = arith.constant 0 : index
    %c0_7 = arith.constant 0 : index
    %9 = vector.load %arg4[%c0_6, %c0_7] : memref<1x128xf32, #tpu.memory_space<vmem>>, vector<1x128xf32>
    "tpu.trace_start"() <{level = 10 : i32, message = "oh,bh->ob"}> : () -> ()
    %cst_8 = arith.constant dense<0.000000e+00> : vector<1x128xf32>
    %10 = tpu.matmul %9, %8, %cst_8 {dimension_numbers = #tpu.dot_dimension_numbers<[1], [1], [0], [0], [0, 0, 1, 0], [], []>} : vector<1x128xf32>, vector<128x128xf32>, vector<1x128xf32> -> vector<1x128xf32>
    "tpu.trace_stop"() : () -> ()
    %c0_9 = arith.constant 0 : index
    %11 = memref.load %arg5[%c0_9] : memref<1xf32, #tpu.memory_space<smem>>
    %12 = vector.broadcast %11 : f32 to vector<1x128xf32>
    %13 = arith.addf %10, %12 : vector<1x128xf32>
    %14 = arith.negf %13 : vector<1x128xf32>
    %15 = math.exp %14 : vector<1x128xf32>
    %cst_10 = arith.constant 1.000000e+00 : f32
    %16 = vector.broadcast %cst_10 : f32 to vector<1x128xf32>
    %17 = arith.addf %16, %15 : vector<1x128xf32>
    %18 = arith.divf %16, %17 : vector<1x128xf32>
    %c0_11 = arith.constant 0 : index
    %c0_12 = arith.constant 0 : index
    %19 = vector.load %arg6[%c0_11, %c0_12] : memref<1x128xf32, #tpu.memory_space<vmem>>, vector<1x128xf32>
    tpu.vector_store %arg6[%c0_11, %c0_12], %18 {strides = array<i32>} : memref<1x128xf32, #tpu.memory_space<vmem>>, vector<1x128xf32>,
    return
  }
  func.func @transform_0(%arg0: i32) -> (i32, i32) {
    %c0_i32 = arith.constant 0 : i32
    %c0_i32_0 = arith.constant 0 : i32
    return %arg0, %c0_i32 : i32, i32
  }
  func.func @transform_1(%arg0: i32) -> (i32, i32) {
    %c0_i32 = arith.constant 0 : i32
    %c0_i32_0 = arith.constant 0 : i32
    %c0_i32_1 = arith.constant 0 : i32
    return %c0_i32, %c0_i32_0 : i32, i32
  }
  func.func @transform_2(%arg0: i32) -> (i32, i32) {
    %c0_i32 = arith.constant 0 : i32
    %c0_i32_0 = arith.constant 0 : i32
    %c0_i32_1 = arith.constant 0 : i32
    return %c0_i32, %c0_i32_0 : i32, i32
  }
  func.func @transform_3(%arg0: i32) -> (i32, i32) {
    %c0_i32 = arith.constant 0 : i32
    %c0_i32_0 = arith.constant 0 : i32
    %c0_i32_1 = arith.constant 0 : i32
    return %c0_i32, %c0_i32_0 : i32, i32
  }
  func.func @transform_4(%arg0: i32) -> i32 {
    %c0_i32 = arith.constant 0 : i32
    %c0_i32_0 = arith.constant 0 : i32
    return %c0_i32 : i32
  }
  func.func @transform_5(%arg0: i32) -> (i32, i32) {
    %c0_i32 = arith.constant 0 : i32
    %c0_i32_0 = arith.constant 0 : i32
    return %c0_i32, %arg0 : i32, i32
  }
}

</mosaic_0001>

<llo_original>
// kernel: discriminator_forward.1
$region0: #{discriminator_forward.1}
  #allocation0 [shape = 'u32[]', space=smem, size = 0x4, offset = 0x4, fixed_abs, tag = 'smem constant byte address 0x4 - core index']
  #allocation1 [shape = 'u32[144,128]{1,0:T(1,128)}', space=vmem, size = 0x12000, scoped, tag = 'internal scratch']
  #allocation2 [shape = 'f32[1]{0:T(128)S(6)}', space=smem, size = 0x200, scoped, tag = 'scoped memory for discriminator_forward.1']
  %s0 = inlined_call_operand.vmem [shape: f32[256,64], index: 0, kind: input, shape index: {}]
  %s1 = inlined_call_operand.vmem [shape: bf16[64,128], index: 1, kind: input, shape index: {}]
  %s2 = inlined_call_operand.vmem [shape: f32[1,128], index: 2, kind: input, shape index: {}]
  %s3 = inlined_call_operand.vmem [shape: f32[1,128], index: 3, kind: input, shape index: {}]
  %s4 = inlined_call_operand.<no memory space> [shape: f32[1], index: 4, kind: input, shape index: {}]
  %s5 = inlined_call_operand.hbm [shape: f32[1,256], index: 5, kind: output, shape index: {}]
  %s6 = sld [smem:[#allocation0]]
  $region53: #{discriminator_forward.1} parent=0
    _
  %s8 = ssub.s32 1, %s6
  %s9 = scalar_select 0, %s8, %s6
  %10 = sst [smem:[#allocation2]] %s4
  $region1: #{discriminator_forward.1} parent=0
    #allocation3 [shape = 'u8[1024]{0}', space=vmem, size = 0x400, scoped, tag = 'output window, operand 0']
    #allocation4 [shape = 's32[2]{0}', space=sflag, size = 0x8, scoped, tag = 'scoped memory for discriminator_forward.1']
    %11 = vsyncpa [#allocation4], 0
    %s12 = scalar_lea.sflag [#allocation4], 1
    %13 = vsyncpa %s12, 0
    loop: start=0, step=1, limit=4
    $region2: #{discriminator_forward.1} parent=1 // loop_pre_header
      _
    $region3: #{discriminator_forward.1} parent=1 // loop_header
      %s15 = sphi 0, %s19
      %p16 = scmp.ge.s32.totalorder %s15, 4
      %s25 = sphi 0, %s27
      %s28 = sphi 0, %s25
      %s29 = sphi 0, %s28
      %s45 = sphi 0, %s29
      %s49 = sphi 0, %s49
      %s51 = sphi 0, %s49
      %s52 = sphi 0, %s51
      %s66 = sphi 0, %s52
      %s70 = sphi 0, %s70
      %s72 = sphi 0, %s70
      %s73 = sphi 0, %s72
      %s87 = sphi 0, %s73
      %s91 = sphi 0, %s91
      %s93 = sphi 0, %s91
      %s94 = sphi 0, %s93
      %s108 = sphi 0, %s94
      %s112 = sphi 0, %s112
      %s114 = sphi 0, %s112
      %s115 = sphi 0, %s114
      %s129 = sphi 0, %s115
      %s135 = sphi 0, %s137
      %s138 = sphi 0, %s135
      %s139 = sphi 0, %s138
      %s155 = sphi 0, %s139
    $region4: #{discriminator_forward.1} parent=1 // loop_header_branch
      %18 = sbr.rel (%p16) target = $region8
    $region5: #{discriminator_forward.1} parent=1 // loop_body
      %s20 = ssub.s32 %s15, 1
      %s21 = ssub.s32 %s15, 2
      %s22 = sadd.s32 %s15, 1
      %s23 = ssub.s32 %s15, %s22
      %p24 = scmp.eq.s32.totalorder %s23, 0
      %s26 = sadd.s32 %s25, 1
      %s27 = scalar_select %p24, %s25, %s26
      %p30 = pneg %p24
      %p31 = scmp.eq.s32.totalorder %s15, 1
      %p32 = por %p30, %p31
      %p33 = scmp.ne.s32.totalorder %s25, %s28
      %p34 = scmp.eq.s32.totalorder %s15, 0
      %p35 = por %p33, %p34
      %p36 = scmp.ne.s32.totalorder %s25, %s28
      %p37 = scmp.eq.s32.totalorder %s20, 1
      %p38 = por %p36, %p37
      %p39 = scmp.ne.s32.totalorder %s28, %s29
      %p40 = scmp.eq.s32.totalorder %s20, 0
      %p41 = por %p39, %p40
      %p42 = scmp.ne.s32.totalorder %s28, %s29
      %p43 = scmp.eq.s32.totalorder %s21, 1
      %p44 = por %p42, %p43
      %p46 = scmp.ne.s32.totalorder %s29, %s45
      %p47 = scmp.eq.s32.totalorder %s21, 0
      %p48 = por %p46, %p47
      %s50 = sadd.s32 %s49, 1
      %p53 = scmp.eq.s32.totalorder %s15, 1
      %p54 = scmp.ne.s32.totalorder %s49, %s51
      %p55 = scmp.eq.s32.totalorder %s15, 0
      %p56 = por %p54, %p55
      %p57 = scmp.ne.s32.totalorder %s49, %s51
      %p58 = scmp.eq.s32.totalorder %s20, 1
      %p59 = por %p57, %p58
      %p60 = scmp.ne.s32.totalorder %s51, %s52
      %p61 = scmp.eq.s32.totalorder %s20, 0
      %p62 = por %p60, %p61
      %p63 = scmp.ne.s32.totalorder %s51, %s52
      %p64 = scmp.eq.s32.totalorder %s21, 1
      %p65 = por %p63, %p64
      %p67 = scmp.ne.s32.totalorder %s52, %s66
      %p68 = scmp.eq.s32.totalorder %s21, 0
      %p69 = por %p67, %p68
      %s71 = sadd.s32 %s70, 1
      %p74 = scmp.eq.s32.totalorder %s15, 1
      %p75 = scmp.ne.s32.totalorder %s70, %s72
      %p76 = scmp.eq.s32.totalorder %s15, 0
      %p77 = por %p75, %p76
      %p78 = scmp.ne.s32.totalorder %s70, %s72
      %p79 = scmp.eq.s32.totalorder %s20, 1
      %p80 = por %p78, %p79
      %p81 = scmp.ne.s32.totalorder %s72, %s73
      %p82 = scmp.eq.s32.totalorder %s20, 0
      %p83 = por %p81, %p82
      %p84 = scmp.ne.s32.totalorder %s72, %s73
      %p85 = scmp.eq.s32.totalorder %s21, 1
      %p86 = por %p84, %p85
      %p88 = scmp.ne.s32.totalorder %s73, %s87
      %p89 = scmp.eq.s32.totalorder %s21, 0
      %p90 = por %p88, %p89
      %s92 = sadd.s32 %s91, 1
      %p95 = scmp.eq.s32.totalorder %s15, 1
      %p96 = scmp.ne.s32.totalorder %s91, %s93
      %p97 = scmp.eq.s32.totalorder %s15, 0
      %p98 = por %p96, %p97
      %p99 = scmp.ne.s32.totalorder %s91, %s93
      %p100 = scmp.eq.s32.totalorder %s20, 1
      %p101 = por %p99, %p100
      %p102 = scmp.ne.s32.totalorder %s93, %s94
      %p103 = scmp.eq.s32.totalorder %s20, 0
      %p104 = por %p102, %p103
      %p105 = scmp.ne.s32.totalorder %s93, %s94
      %p106 = scmp.eq.s32.totalorder %s21, 1
      %p107 = por %p105, %p106
      %p109 = scmp.ne.s32.totalorder %s94, %s108
      %p110 = scmp.eq.s32.totalorder %s21, 0
      %p111 = por %p109, %p110
      %s113 = sadd.s32 %s112, 1
      %p116 = scmp.eq.s32.totalorder %s15, 1
      %p117 = scmp.ne.s32.totalorder %s112, %s114
      %p118 = scmp.eq.s32.totalorder %s15, 0
      %p119 = por %p117, %p118
      %p120 = scmp.ne.s32.totalorder %s112, %s114
      %p121 = scmp.eq.s32.totalorder %s20, 1
      %p122 = por %p120, %p121
      %p123 = scmp.ne.s32.totalorder %s114, %s115
      %p124 = scmp.eq.s32.totalorder %s20, 0
      %p125 = por %p123, %p124
      %p126 = scmp.ne.s32.totalorder %s114, %s115
      %p127 = scmp.eq.s32.totalorder %s21, 1
      %p128 = por %p126, %p127
      %p130 = scmp.ne.s32.totalorder %s115, %s129
      %p131 = scmp.eq.s32.totalorder %s21, 0
      %p132 = por %p130, %p131
      %s133 = ssub.s32 %s15, %s22
      %p134 = scmp.eq.s32.totalorder %s133, 0
      %s136 = sadd.s32 %s135, 1
      %s137 = scalar_select %p134, %s135, %s136
      %p140 = pneg %p134
      %p141 = scmp.eq.s32.totalorder %s15, 1
      %p142 = por %p140, %p141
      %p143 = scmp.ne.s32.totalorder %s135, %s138
      %p144 = scmp.eq.s32.totalorder %s15, 0
      %p145 = por %p143, %p144
      %p146 = scmp.ne.s32.totalorder %s135, %s138
      %p147 = scmp.eq.s32.totalorder %s20, 1
      %p148 = por %p146, %p147
      %p149 = scmp.ne.s32.totalorder %s138, %s139
      %p150 = scmp.eq.s32.totalorder %s20, 0
      %p151 = por %p149, %p150
      %p152 = scmp.ne.s32.totalorder %s138, %s139
      %p153 = scmp.eq.s32.totalorder %s21, 1
      %p154 = por %p152, %p153
      %p156 = scmp.ne.s32.totalorder %s139, %s155
      %p157 = scmp.eq.s32.totalorder %s21, 0
      %p158 = por %p156, %p157
      %p159 = scmp.le.s32.totalorder 1, %s15
      %p160 = scmp.lt.s32.totalorder %s15, 3
      %p161 = pnand %p159, %p160
      %p162 = pneg %p161
      // Predicated region
      $region9: #{discriminator_forward.1} parent=5 // pred_check
        _
      $region10: #{discriminator_forward.1} parent=5 // pred_check_branch
        %164 = sbr.rel (%p161) target = $region12
      $region11: #{discriminator_forward.1} parent=5 // pred_region
        %s165 = ssub.s32 %s15, 1
        // Predicated region
        $region13: #{discriminator_forward.1} parent=11 // pred_check
          %p166 = pneg %p62
        $region14: #{discriminator_forward.1} parent=11 // pred_check_branch
          %168 = sbr.rel (%p166) target = $region16
        $region15: #{discriminator_forward.1} parent=11 // pred_region
          _
        $region16: #{discriminator_forward.1} parent=11 // pred_fallthru
          _
        // Predicated region
        $region17: #{discriminator_forward.1} parent=11 // pred_check
          %p169 = pneg %p83
        $region18: #{discriminator_forward.1} parent=11 // pred_check_branch
          %171 = sbr.rel (%p169) target = $region20
        $region19: #{discriminator_forward.1} parent=11 // pred_region
          _
        $region20: #{discriminator_forward.1} parent=11 // pred_fallthru
          _
        // Predicated region
        $region21: #{discriminator_forward.1} parent=11 // pred_check
          %p172 = pneg %p104
        $region22: #{discriminator_forward.1} parent=11 // pred_check_branch
          %174 = sbr.rel (%p172) target = $region24
        $region23: #{discriminator_forward.1} parent=11 // pred_region
          _
        $region24: #{discriminator_forward.1} parent=11 // pred_fallthru
          _
        // Predicated region
        $region25: #{discriminator_forward.1} parent=11 // pred_check
          %p175 = pneg %p125
        $region26: #{discriminator_forward.1} parent=11 // pred_check_branch
          %177 = sbr.rel (%p175) target = $region28
        $region27: #{discriminator_forward.1} parent=11 // pred_region
          _
        $region28: #{discriminator_forward.1} parent=11 // pred_fallthru
          _
      $region12: #{discriminator_forward.1} parent=5 // pred_fallthru
        _
      %p178 = scmp.lt.s32.totalorder %s15, 2
      // Predicated region
      $region29: #{discriminator_forward.1} parent=5 // pred_check
        %p179 = pneg %p178
      $region30: #{discriminator_forward.1} parent=5 // pred_check_branch
        %181 = sbr.rel (%p179) target = $region32
      $region31: #{discriminator_forward.1} parent=5 // pred_region
        // Predicated region
        $region33: #{discriminator_forward.1} parent=31 // pred_check
          %p182 = pneg %p35
        $region34: #{discriminator_forward.1} parent=31 // pred_check_branch
          %184 = sbr.rel (%p182) target = $region36
        $region35: #{discriminator_forward.1} parent=31 // pred_region
          %s185 = smul.u32 16, %s15
          %p186 = scmp.lt.s32.totalorder %s185, 31
          %s187 = scalar_select %p186, %s185, 31
          %s188 = smul.addr %s187, 8
          %s189 = scalar_lea.vmem %s0, %s188
          %s190 = smul.u32 16, %s15
        $region36: #{discriminator_forward.1} parent=31 // pred_fallthru
          _
      $region32: #{discriminator_forward.1} parent=5 // pred_fallthru
        _
      %p191 = scmp.le.s32.totalorder 1, %s15
      %p192 = scmp.lt.s32.totalorder %s15, 3
      %p193 = pnand %p191, %p192
      %p194 = pneg %p193
      // Predicated region
      $region37: #{discriminator_forward.1} parent=5 // pred_check
        _
      $region38: #{discriminator_forward.1} parent=5 // pred_check_branch
        %196 = sbr.rel (%p193) target = $region40
      $region39: #{discriminator_forward.1} parent=5 // pred_region
        %s197 = ssub.s32 %s15, 1
        %s198 = smul.u32 16, %s20
        %p199 = scmp.lt.s32.totalorder %s198, 31
        %s200 = scalar_select %p199, %s198, 31
        %s201 = smul.addr %s200, 8
        %s202 = scalar_lea.vmem %s0, %s201
        %p203 = pneg %p41
        %p204 = pneg %p38
        %p205 = pneg %p62
        %p206 = pneg %p59
        %p207 = pneg %p83
        %p208 = pneg %p80
        %p209 = pneg %p104
        %p210 = pneg %p101
        %p211 = pneg %p125
        %p212 = pneg %p122
        %p213 = pneg %p151
        %p214 = pneg %p148
        %s215 = sand.u32 %s138, 1
        %s216 = scalar_lea.sflag [#allocation4], %s215
        %s217 = sand.u32 %s138, 1
        %s218 = scalar_lea.vmem [#allocation3], %s217
        %s219 = smul.u32 16, %s20
        %p220 = scmp.lt.s32.totalorder %s219, 31
        %s221 = scalar_select %p220, %s219, 31
        %s222 = smul.addr %s221, 8
        %s223 = scalar_lea.vmem %s0, %s222
        %s224 = smul.u32 16, %s20
        %v226 = vld [vmem:[%s223] sm:$0xff]
        %v227 = vld [vmem:[%s223 + $0x8] sm:$0xff]
        %v228 = vld [vmem:[%s223 + $0x10] sm:$0xff]
        %v229 = vld [vmem:[%s223 + $0x18] sm:$0xff]
        %v230 = vld [vmem:[%s223 + $0x20] sm:$0xff]
        %v231 = vld [vmem:[%s223 + $0x28] sm:$0xff]
        %v232 = vld [vmem:[%s223 + $0x30] sm:$0xff]
        %v233 = vld [vmem:[%s223 + $0x38] sm:$0xff]
        %v234 = vld [vmem:[%s223 + $0x40] sm:$0xff]
        %v235 = vld [vmem:[%s223 + $0x48] sm:$0xff]
        %v236 = vld [vmem:[%s223 + $0x50] sm:$0xff]
        %v237 = vld [vmem:[%s223 + $0x58] sm:$0xff]
        %v238 = vld [vmem:[%s223 + $0x60] sm:$0xff]
        %v239 = vld [vmem:[%s223 + $0x68] sm:$0xff]
        %v240 = vld [vmem:[%s223 + $0x70] sm:$0xff]
        %v241 = vld [vmem:[%s223 + $0x78] sm:$0xff]
        %v242 = vpack.c.bf16 %v227, %v226
        %v243 = vpack.c.bf16 %v229, %v228
        %v244 = vpack.c.bf16 %v231, %v230
        %v245 = vpack.c.bf16 %v233, %v232
        %v246 = vpack.c.bf16 %v235, %v234
        %v247 = vpack.c.bf16 %v237, %v236
        %v248 = vpack.c.bf16 %v239, %v238
        %v249 = vpack.c.bf16 %v241, %v240
        %v250 = vld [vmem:[%s1] sm:$0xf]
        %v251 = vld [vmem:[%s1 + $0x4] sm:$0xf]
        %v252 = vld [vmem:[%s1 + $0x8] sm:$0xf]
        %v253 = vld [vmem:[%s1 + $0xc] sm:$0xf]
        %v254 = vld [vmem:[%s1 + $0x10] sm:$0xf]
        %v255 = vld [vmem:[%s1 + $0x14] sm:$0xf]
        %v256 = vld [vmem:[%s1 + $0x18] sm:$0xf]
        %v257 = vld [vmem:[%s1 + $0x1c] sm:$0xf]
        %v258 = vld [vmem:[%s2] sm:$0x1]
        %v260 = vlaneseq
        %v261 = vshrl.u32 %v260, 7
        %v262 = vsub.s32 0, %v261
        %v263 = vrot.slane %v258, %v262
        %v273 = vunpack.c.l.b16 %v250
        %v274 = vunpack.c.l.b16 %v251
        %v275 = vunpack.c.l.b16 %v252
        %v276 = vunpack.c.l.b16 %v253
        %v277 = vunpack.c.l.b16 %v254
        %v278 = vunpack.c.l.b16 %v255
        %v279 = vunpack.c.l.b16 %v256
        %v280 = vunpack.c.l.b16 %v257
        %v281 = vpack.c.b16 %v274, %v273
        %v282 = vpack.c.b16 %v276, %v275
        %v283 = vpack.c.b16 %v278, %v277
        %v284 = vpack.c.b16 %v280, %v279
        %vm289 = vcmask 523264
        %v291 = vsel %vm289, %v242, 0
        %v294 = vsel %vm289, %v243, 0
        %v297 = vsel %vm289, %v244, 0
        %v300 = vsel %vm289, %v245, 0
        %v303 = vsel %vm289, %v246, 0
        %v306 = vsel %vm289, %v247, 0
        %v309 = vsel %vm289, %v248, 0
        %v312 = vsel %vm289, %v249, 0
        %314 = vmatprep.subr.bf16.mxu0 0
        %315 = vmatpush1.bf16.msra.mxu0 %v281
        %316 = vmatprep.subr.bf16.mxu0 0
        %317 = vmatpush1.bf16.msra.mxu0 %v282
        %318 = vmatprep.subr.bf16.mxu0 0
        %319 = vmatpush1.bf16.msra.mxu0 %v283
        %320 = vmatprep.subr.bf16.mxu0 0
        %321 = vmatpush1.bf16.msra.mxu0 %v284
        %322 = vmatprep.subr.bf16.mxu0 0
        %323 = vmatpush1.bf16.msra.mxu0 0
        %324 = vmatprep.subr.bf16.mxu0 0
        %325 = vmatpush1.bf16.msra.mxu0 0
        %326 = vmatprep.subr.bf16.mxu0 0
        %327 = vmatpush1.bf16.msra.mxu0 0
        %328 = vmatprep.subr.bf16.mxu0 0
        %329 = vmatpush1.bf16.msra.mxu0 0
        %330 = vmatprep.subr.bf16.mxu0 0
        %331 = vmatpush1.bf16.msra.mxu0 0
        %332 = vmatprep.subr.bf16.mxu0 0
        %333 = vmatpush1.bf16.msra.mxu0 0
        %334 = vmatprep.subr.bf16.mxu0 0
        %335 = vmatpush1.bf16.msra.mxu0 0
        %336 = vmatprep.subr.bf16.mxu0 0
        %337 = vmatpush1.bf16.msra.mxu0 0
        %338 = vmatprep.subr.bf16.mxu0 0
        %339 = vmatpush1.bf16.msra.mxu0 0
        %340 = vmatprep.subr.bf16.mxu0 0
        %341 = vmatpush1.bf16.msra.mxu0 0
        %342 = vmatprep.subr.bf16.mxu0 0
        %343 = vmatpush1.bf16.msra.mxu0 0
        %344 = vmatprep.subr.bf16.mxu0 0
        %345 = vmatpush1.bf16.msra.mxu0 0
        %346 = vmatprep.mubr.bf16.mxu0 0
        %347 = vmatmul.mubr.bf16.gmra.mrb[0].mxu0 %v291
        %v348 = vpop.f32.mrb[0].mxu0
        %v349 = vadd.f32 %v263, %v348
        %v350 = vpop.f32.mrb[0].mxu0
        %v351 = vpop.f32.mrb[0].mxu0
        %v352 = vadd.f32 %v263, %v351
        %v353 = vpop.f32.mrb[0].mxu0
        %354 = vmatprep.mubr.bf16.mxu0 0
        %355 = vmatmul.mubr.bf16.gmra.mrb[0].mxu0 %v294
        %v356 = vpop.f32.mrb[0].mxu0
        %v357 = vadd.f32 %v263, %v356
        %v358 = vpop.f32.mrb[0].mxu0
        %v359 = vpop.f32.mrb[0].mxu0
        %v360 = vadd.f32 %v263, %v359
        %v361 = vpop.f32.mrb[0].mxu0
        %362 = vmatprep.mubr.bf16.mxu0 0
        %363 = vmatmul.mubr.bf16.gmra.mrb[0].mxu0 %v297
        %v364 = vpop.f32.mrb[0].mxu0
        %v365 = vadd.f32 %v263, %v364
        %v366 = vpop.f32.mrb[0].mxu0
        %v367 = vpop.f32.mrb[0].mxu0
        %v368 = vadd.f32 %v263, %v367
        %v369 = vpop.f32.mrb[0].mxu0
        %370 = vmatprep.mubr.bf16.mxu0 0
        %371 = vmatmul.mubr.bf16.gmra.mrb[0].mxu0 %v300
        %v372 = vpop.f32.mrb[0].mxu0
        %v373 = vadd.f32 %v263, %v372
        %v374 = vpop.f32.mrb[0].mxu0
        %v375 = vpop.f32.mrb[0].mxu0
        %v376 = vadd.f32 %v263, %v375
        %v377 = vpop.f32.mrb[0].mxu0
        %378 = vmatprep.mubr.bf16.mxu0 0
        %379 = vmatmul.mubr.bf16.gmra.mrb[0].mxu0 %v303
        %v380 = vpop.f32.mrb[0].mxu0
        %v381 = vadd.f32 %v263, %v380
        %v382 = vpop.f32.mrb[0].mxu0
        %v383 = vpop.f32.mrb[0].mxu0
        %v384 = vadd.f32 %v263, %v383
        %v385 = vpop.f32.mrb[0].mxu0
        %386 = vmatprep.mubr.bf16.mxu0 0
        %387 = vmatmul.mubr.bf16.gmra.mrb[0].mxu0 %v306
        %v388 = vpop.f32.mrb[0].mxu0
        %v389 = vadd.f32 %v263, %v388
        %v390 = vpop.f32.mrb[0].mxu0
        %v391 = vpop.f32.mrb[0].mxu0
        %v392 = vadd.f32 %v263, %v391
        %v393 = vpop.f32.mrb[0].mxu0
        %394 = vmatprep.mubr.bf16.mxu0 0
        %395 = vmatmul.mubr.bf16.gmra.mrb[0].mxu0 %v309
        %v396 = vpop.f32.mrb[0].mxu0
        %v397 = vadd.f32 %v263, %v396
        %v398 = vpop.f32.mrb[0].mxu0
        %v399 = vpop.f32.mrb[0].mxu0
        %v400 = vadd.f32 %v263, %v399
        %v401 = vpop.f32.mrb[0].mxu0
        %402 = vmatprep.mubr.bf16.mxu0 0
        %403 = vmatmul.mubr.bf16.gmra.mrb[0].mxu0 %v312
        %v404 = vpop.f32.mrb[0].mxu0
        %v405 = vadd.f32 %v263, %v404
        %v406 = vpop.f32.mrb[0].mxu0
        %v407 = vpop.f32.mrb[0].mxu0
        %v408 = vadd.f32 %v263, %v407
        %v409 = vpop.f32.mrb[0].mxu0
        %410 = vdwg.mxu0
        %v411 = vmax.f32 %v349, 0.0
        %v412 = vmax.f32 %v352, 0.0
        %v413 = vmax.f32 %v357, 0.0
        %v414 = vmax.f32 %v360, 0.0
        %v415 = vmax.f32 %v365, 0.0
        %v416 = vmax.f32 %v368, 0.0
        %v417 = vmax.f32 %v373, 0.0
        %v418 = vmax.f32 %v376, 0.0
        %v419 = vmax.f32 %v381, 0.0
        %v420 = vmax.f32 %v384, 0.0
        %v421 = vmax.f32 %v389, 0.0
        %v422 = vmax.f32 %v392, 0.0
        %v423 = vmax.f32 %v397, 0.0
        %v424 = vmax.f32 %v400, 0.0
        %v425 = vmax.f32 %v405, 0.0
        %v426 = vmax.f32 %v408, 0.0
        %v427 = vld [vmem:[%s3] sm:$0x1]
        %s428 = sld [smem:[#allocation2]]
        %v429 = vstv %s428
        %430 = vmatprep.subr.mxu0 0.0
        %431 = vmatpush1.xpose.msra.mxu0 %v411
        %432 = vmatprep.subr.mxu0 0.0
        %433 = vmatpush1.xpose.msra.mxu0 %v412
        %434 = vmatprep.subr.mxu0 0.0
        %435 = vmatpush1.xpose.msra.mxu0 %v413
        %436 = vmatprep.subr.mxu0 0.0
        %437 = vmatpush1.xpose.msra.mxu0 %v414
        %438 = vmatprep.subr.mxu0 0.0
        %439 = vmatpush1.xpose.msra.mxu0 %v415
        %440 = vmatprep.subr.mxu0 0.0
        %441 = vmatpush1.xpose.msra.mxu0 %v416
        %442 = vmatprep.subr.mxu0 0.0
        %443 = vmatpush1.xpose.msra.mxu0 %v417
        %444 = vmatprep.subr.mxu0 0.0
        %445 = vmatpush1.xpose.msra.mxu0 %v418
        %446 = vmatprep.subr.mxu0 0.0
        %447 = vmatpush1.xpose.msra.mxu0 %v419
        %448 = vmatprep.subr.mxu0 0.0
        %449 = vmatpush1.xpose.msra.mxu0 %v420
        %450 = vmatprep.subr.mxu0 0.0
        %451 = vmatpush1.xpose.msra.mxu0 %v421
        %452 = vmatprep.subr.mxu0 0.0
        %453 = vmatpush1.xpose.msra.mxu0 %v422
        %454 = vmatprep.subr.mxu0 0.0
        %455 = vmatpush1.xpose.msra.mxu0 %v423
        %456 = vmatprep.subr.mxu0 0.0
        %457 = vmatpush1.xpose.msra.mxu0 %v424
        %458 = vmatprep.subr.mxu0 0.0
        %459 = vmatpush1.xpose.msra.mxu0 %v425
        %460 = vmatprep.subr.mxu0 0.0
        %461 = vmatpush1.xpose.msra.mxu0 %v426
        %462 = vmatprep.subr.mxu0 0.0
        %463 = vmatpush1.xpose.msra.mxu0 0.0
        %464 = vmatprep.subr.mxu0 0.0
        %465 = vmatpush1.xpose.msra.mxu0 0.0
        %466 = vmatprep.subr.mxu0 0.0
        %467 = vmatpush1.xpose.msra.mxu0 0.0
        %468 = vmatprep.subr.mxu0 0.0
        %469 = vmatpush1.xpose.msra.mxu0 0.0
        %470 = vmatprep.subr.mxu0 0.0
        %471 = vmatpush1.xpose.msra.mxu0 0.0
        %472 = vmatprep.subr.mxu0 0.0
        %473 = vmatpush1.xpose.msra.mxu0 0.0
        %474 = vmatprep.subr.mxu0 0.0
        %475 = vmatpush1.xpose.msra.mxu0 0.0
        %476 = vmatprep.subr.mxu0 0.0
        %477 = vmatpush1.xpose.msra.mxu0 0.0
        %478 = vmatprep.subr.mxu0 0.0
        %479 = vmatpush1.xpose.msra.mxu0 0.0
        %480 = vmatprep.subr.mxu0 0.0
        %481 = vmatpush1.xpose.msra.mxu0 0.0
        %482 = vmatprep.subr.mxu0 0.0
        %483 = vmatpush1.xpose.msra.mxu0 0.0
        %484 = vmatprep.subr.mxu0 0.0
        %485 = vmatpush1.xpose.msra.mxu0 0.0
        %486 = vmatprep.subr.mxu0 0.0
        %487 = vmatpush1.xpose.msra.mxu0 0.0
        %488 = vmatprep.subr.mxu0 0.0
        %489 = vmatpush1.xpose.msra.mxu0 0.0
        %490 = vmatprep.subr.mxu0 0.0
        %491 = vmatpush1.xpose.msra.mxu0 0.0
        %492 = vmatprep.subr.mxu0 0.0
        %493 = vmatpush1.xpose.msra.mxu0 0.0
        %494 = vmatprep.mubr.f32.mxu0 0.0
        %495 = vmatmul.mubr.f32.gmra.mrb[0].mxu0 %v427
        %v496 = vpop.f32.mrb[0].mxu0
        %v497 = vadd.f32 %v429, %v496
        %v498 = vpop.f32.mrb[0].mxu0
        %499 = vdwg.mxu0
        %v500 = vxor.u32 %v497, 2147483648
        %v501 = vmul.f32 %v500, 1.442695
        %v502 = vpow.pop %v501
        %v503 = vadd.f32 %v502, 1.0
        %v504 = vrcp.pop %v503
        %v505 = vmul.f32 1.0, %v504
        %506 = vst [vmem:[%s218] sm:$0x1] %v505
        %s507 = sand.u32 %s138, 1
        %s508 = scalar_lea.sflag [#allocation4], %s507
        %s509 = sand.u32 %s138, 1
        %s510 = scalar_lea.vmem [#allocation3], %s509
        // Predicated region
        $region41: #{discriminator_forward.1} parent=39 // pred_check
          %p511 = pneg %p148
        $region42: #{discriminator_forward.1} parent=39 // pred_check_branch
          %513 = sbr.rel (%p511) target = $region44
        $region43: #{discriminator_forward.1} parent=39 // pred_region
          %s515 = ssub.s32 16, 16
          %516 = vsyncadd %s508, %s515
          %s517 = smul.addr %s20, 16
          %s518 = scalar_lea.hbm %s5, %s517
          %s520 = sshll.u32 %s510, 4
          %s521 = int_to_ptr.vmem [resolvable:$true] %s520
          %523 = dma.vmem_to_hbm [thread:$0]  %s521, 16, %s518, %s508
        $region44: #{discriminator_forward.1} parent=39 // pred_fallthru
          _
      $region40: #{discriminator_forward.1} parent=5 // pred_fallthru
        _
      %p524 = scmp.le.s32.totalorder 2, %s15
      // Predicated region
      $region45: #{discriminator_forward.1} parent=5 // pred_check
        %p525 = pneg %p524
      $region46: #{discriminator_forward.1} parent=5 // pred_check_branch
        %527 = sbr.rel (%p525) target = $region48
      $region47: #{discriminator_forward.1} parent=5 // pred_region
        %s528 = ssub.s32 %s15, 2
        // Predicated region
        $region49: #{discriminator_forward.1} parent=47 // pred_check
          %p529 = pneg %p154
        $region50: #{discriminator_forward.1} parent=47 // pred_check_branch
          %531 = sbr.rel (%p529) target = $region52
        $region51: #{discriminator_forward.1} parent=47 // pred_region
          %s532 = sand.u32 %s139, 1
          %s533 = scalar_lea.sflag [#allocation4], %s532
          %s534 = sand.u32 %s139, 1
          %s535 = scalar_lea.vmem [#allocation3], %s534
          %536 = dma.done %s533, 16
        $region52: #{discriminator_forward.1} parent=47 // pred_fallthru
          _
      $region48: #{discriminator_forward.1} parent=5 // pred_fallthru
        _
    $region6: #{discriminator_forward.1} parent=1 // loop_footer
      %s19 = sadd.s32 1, %s15
    $region7: #{discriminator_forward.1} parent=1 // loop_footer_branch
      %14 = sbr.rel target = $region3
    $region8: #{discriminator_forward.1} parent=1 // loop_exit
      _
    %537 = vsyncpa [#allocation4], 1
    %s538 = scalar_lea.sflag [#allocation4], 1
    %539 = vsyncpa %s538, 1

</llo_original>
